<compile_context>
chip_gen: v7x
topology: tpu7x:2x2x1
jax: 0.10.0
libtpu: 0.0.40
codegen_flags: <defaults>
</compile_context>

<pallas_src>
from functools import partial

import jax
import jax.numpy as jnp
from jax.experimental import pallas as pl
from jax.experimental.pallas import tpu as pltpu

# ---------------- configuration (small synthetic shapes) ----------------
BATCH = 2
SEQ = 8
HIDDEN = 32          # config.hidden_size
INTER = 64           # config.intermediate_size
NUM_EXPERTS = 4      # config.num_experts
TM_MAX = 256         # max token tile (take min with T)

RMS_EPS = 1e-8


# ---------------- BitLinear helpers ----------------
def _weight_quant_ternary(w):
    """Ternary BitLinear weight quant, split into {-1,0,1} codes (bf16, exact)
    plus the scalar dequant factor (so matmuls can run unscaled in bf16)."""
    s = jnp.maximum(jnp.mean(jnp.abs(w)), 1e-5)            # dequant factor
    tern = jnp.clip(jnp.round(w / s), -1.0, 1.0)           # {-1, 0, 1}
    return tern.astype(jnp.bfloat16), s.astype(jnp.float32)


def _rms_actquant(x):
    """RMSNorm(eps=1e-8, unit weight) + per-token 8-bit fake activation quant,
    with the dequant scale deferred: returns (int codes as bf16, per-row factor)
    such that quantized_x == codes * factor."""
    var = jnp.mean(x * x, axis=-1, keepdims=True)
    xn = x * jax.lax.rsqrt(var + RMS_EPS)
    amax = jnp.maximum(jnp.max(jnp.abs(xn), axis=-1, keepdims=True), 1e-5)
    q = jnp.clip(jnp.round(xn * (127.0 / amax)), -128.0, 127.0)
    return q.astype(jnp.bfloat16), amax * (1.0 / 127.0)


# ---------------- Pallas kernel ----------------
def moe_kernel(x_ref, wr_ref, wg_ref, wd_ref, wr_s_ref, wg_s_ref, wd_s_ref,
               out_ref, logits_ref,
               xq_sc, xf_sc, p_sc, acc_sc, *, inter):
    e = pl.program_id(1)
    n_e = pl.num_programs(1)

    # ---- once per token tile: norm/quant x, router logits, softmax, init acc ----
    @pl.when(e == 0)
    def _init():
        x = x_ref[...].astype(jnp.float32)                 # [tm, H]
        xq, xfac = _rms_actquant(x)                        # bf16 codes, f32 [tm,1]
        xq_sc[...] = xq
        xf_sc[...] = xfac

        # router BitLinear: bf16 integer-code x ternary-code matmul, scales after
        logits = jnp.dot(xq, wr_ref[...], preferred_element_type=jnp.float32)
        logits = logits * (xfac * wr_s_ref[0])             # [tm, E]
        logits_ref[...] = logits.astype(logits_ref.dtype)

        # softmax in f32 (normalization via EUP approx reciprocal)
        m = jnp.max(logits, axis=-1, keepdims=True)
        p = jnp.exp(logits - m)
        denom = jnp.sum(p, axis=-1, keepdims=True)
        p_sc[...] = p * pl.reciprocal(denom, approx=True)

        acc_sc[...] = jnp.zeros_like(acc_sc)

    # ---- per expert (streamed weight blocks) ----
    xq = xq_sc[...]                                        # bf16 [tm, H]
    xfac = xf_sc[...]                                      # f32  [tm, 1]

    y = jnp.dot(xq, wg_ref[0], preferred_element_type=jnp.float32)  # [tm, 2I]
    y = y * (xfac * wg_s_ref[e])
    gate = y[:, :inter]
    up = y[:, inter:]
    h = gate * jax.nn.sigmoid(gate) * up                   # swiglu, f32

    hq, hfac = _rms_actquant(h)                            # fresh quant (h differs per expert)
    z = jnp.dot(hq, wd_ref[0], preferred_element_type=jnp.float32)  # [tm, H]
    z = z * (hfac * wd_s_ref[e])

    # routing weight of expert e for each token (lane-select from probs scratch)
    lane = jax.lax.broadcasted_iota(jnp.int32, p_sc.shape, 1)
    w_e = jnp.sum(jnp.where(lane == e, p_sc[...], 0.0), axis=-1, keepdims=True)

    acc_sc[...] = acc_sc[...] + w_e * z

    @pl.when(e == n_e - 1)
    def _fin():
        out_ref[...] = acc_sc[...].astype(out_ref.dtype)


# ---------------- wrapper ----------------
def ds_hybrid_moe_block(x, wr_t, wr_s, wg_t, wg_s, wd_t, wd_s, *, tm=None):
    """x: [B,S,H]; wr_t: [H,E] bf16 ternary; wg_t: [E,H,2I]; wd_t: [E,I,H];
    wr_s: [1], wg_s: [E], wd_s: [E] f32 scalar weight dequant factors."""
    B, S, H = x.shape
    E = wr_t.shape[-1]
    two_i = wg_t.shape[-1]
    inter = two_i // 2
    T = B * S
    if tm is None:
        tm = min(TM_MAX, T)
    assert T % tm == 0 and tm % 8 == 0
    xt = x.reshape(T, H)

    out, logits = pl.pallas_call(
        partial(moe_kernel, inter=inter),
        out_shape=(jax.ShapeDtypeStruct((T, H), x.dtype),
                   jax.ShapeDtypeStruct((T, E), jnp.float32)),
        grid_spec=pltpu.PrefetchScalarGridSpec(
            num_scalar_prefetch=0,
            grid=(T // tm, E),                             # tokens parallel, experts arbitrary
            in_specs=[
                pl.BlockSpec((tm, H), lambda i, e: (i, 0)),            # token tile (reused over e)
                pl.BlockSpec((H, E), lambda i, e: (0, 0)),             # router weight (resident)
                pl.BlockSpec((1, H, two_i), lambda i, e: (e, 0, 0)),   # streamed gate/up weights
                pl.BlockSpec((1, inter, H), lambda i, e: (e, 0, 0)),   # streamed down weights
                pl.BlockSpec(memory_space=pltpu.MemorySpace.SMEM),     # router weight scale [1]
                pl.BlockSpec(memory_space=pltpu.MemorySpace.SMEM),     # gate weight scales  [E]
                pl.BlockSpec(memory_space=pltpu.MemorySpace.SMEM),     # down weight scales  [E]
            ],
            out_specs=[
                pl.BlockSpec((tm, H), lambda i, e: (i, 0)),
                pl.BlockSpec((tm, E), lambda i, e: (i, 0)),
            ],
            scratch_shapes=[
                pltpu.VMEM((tm, H), jnp.bfloat16),   # xq codes (shared across experts)
                pltpu.VMEM((tm, 1), jnp.float32),    # per-token activation dequant factor
                pltpu.VMEM((tm, E), jnp.float32),    # routing probs
                pltpu.VMEM((tm, H), jnp.float32),    # f32 accumulator
            ],
        ),
        compiler_params=pltpu.CompilerParams(
            dimension_semantics=("parallel", "arbitrary"),
            vmem_limit_bytes=64 * 1024 * 1024),      # headroom for larger tm at real shapes
    )(xt, wr_t, wg_t, wd_t, wr_s, wg_s, wd_s)
    return out.reshape(B, S, H), logits


# ---------------- pure-JAX reference (original BitLinear math) ----------------
def _bitlinear_ref(x, w_q):
    var = jnp.mean(x * x, axis=-1, keepdims=True)
    xn = x * jax.lax.rsqrt(var + RMS_EPS)
    scale = 127.0 / jnp.maximum(jnp.max(jnp.abs(xn), axis=-1, keepdims=True), 1e-5)
    xq = jnp.clip(jnp.round(xn * scale), -128.0, 127.0) / scale
    return jnp.dot(xq, w_q, preferred_element_type=jnp.float32)


def reference(x, wr_q, wg_q, wd_q):
    B, S, H = x.shape
    xt = x.reshape(-1, H).astype(jnp.float32)
    inter = wg_q.shape[-1] // 2
    logits = _bitlinear_ref(xt, wr_q)
    probs = jax.nn.softmax(logits, axis=-1)
    outs = []
    for e in range(wg_q.shape[0]):
        y = _bitlinear_ref(xt, wg_q[e])
        gate, up = y[:, :inter], y[:, inter:]
        h = gate * jax.nn.sigmoid(gate) * up
        outs.append(_bitlinear_ref(h, wd_q[e]))
    stacked = jnp.stack(outs, axis=1)                      # [T, E, H]
    final = jnp.sum(stacked * probs[:, :, None], axis=1)
    return final.reshape(B, S, H).astype(x.dtype), logits


# ---------------- main ----------------
if __name__ == "__main__":
    key = jax.random.PRNGKey(0)
    kx, kr, kg, kd = jax.random.split(key, 4)

    x = jax.random.normal(kx, (BATCH, SEQ, HIDDEN), dtype=jnp.float32)

    # Deterministic parameter init (nn.Linear-like scaling), stored [in, out].
    w_router = jax.random.normal(kr, (HIDDEN, NUM_EXPERTS), jnp.float32) / jnp.sqrt(HIDDEN)
    w_gate = jax.random.normal(kg, (NUM_EXPERTS, HIDDEN, 2 * INTER), jnp.float32) / jnp.sqrt(HIDDEN)
    w_down = jax.random.normal(kd, (NUM_EXPERTS, INTER, HIDDEN), jnp.float32) / jnp.sqrt(INTER)

    # Ternary BitLinear weight quant (static -> precomputed), split into
    # bf16 {-1,0,1} codes + scalar dequant factors.
    wr_t, wr_s0 = _weight_quant_ternary(w_router)
    wg_pairs = [_weight_quant_ternary(w_gate[e]) for e in range(NUM_EXPERTS)]
    wd_pairs = [_weight_quant_ternary(w_down[e]) for e in range(NUM_EXPERTS)]
    wg_t = jnp.stack([t for t, _ in wg_pairs])
    wg_s = jnp.stack([s for _, s in wg_pairs])
    wd_t = jnp.stack([t for t, _ in wd_pairs])
    wd_s = jnp.stack([s for _, s in wd_pairs])
    wr_s = wr_s0.reshape(1)

    out, router_logits = ds_hybrid_moe_block(x, wr_t, wr_s, wg_t, wg_s, wd_t, wd_s)
    out = jax.block_until_ready(out)
    router_logits = jax.block_until_ready(router_logits)

    # Reference uses the fully dequantized f32 weights (codes * scale).
    wr_q = wr_t.astype(jnp.float32) * wr_s[0]
    wg_q = wg_t.astype(jnp.float32) * wg_s[:, None, None]
    wd_q = wd_t.astype(jnp.float32) * wd_s[:, None, None]
    ref_out, ref_logits = reference(x, wr_q, wg_q, wd_q)

    assert out.shape == (BATCH, SEQ, HIDDEN)
    assert router_logits.shape == (BATCH * SEQ, NUM_EXPERTS)
    assert jnp.allclose(out, ref_out, rtol=1e-2, atol=1e-2)
    assert jnp.allclose(router_logits, ref_logits, rtol=1e-2, atol=1e-2)

    print("KERNEL_OK")
</pallas_src>

<mosaic_0001>
module attributes {stable_mosaic.version = 11 : i64} {
  func.func @moe_kernel(%arg0: i32, %arg1: i32, %arg2: memref<16x32xf32, #tpu.memory_space<vmem>>, %arg3: memref<32x4xbf16, #tpu.memory_space<vmem>>, %arg4: memref<1x32x128xbf16, #tpu.memory_space<vmem>>, %arg5: memref<1x64x32xbf16, #tpu.memory_space<vmem>>, %arg6: memref<1xf32, #tpu.memory_space<smem>>, %arg7: memref<4xf32, #tpu.memory_space<smem>>, %arg8: memref<4xf32, #tpu.memory_space<smem>>, %arg9: memref<16x32xf32, #tpu.memory_space<vmem>>, %arg10: memref<16x4xf32, #tpu.memory_space<vmem>>, %arg11: memref<16x32xbf16, #tpu.memory_space<vmem>>, %arg12: memref<16x1xf32, #tpu.memory_space<vmem>>, %arg13: memref<16x4xf32, #tpu.memory_space<vmem>>, %arg14: memref<16x32xf32, #tpu.memory_space<vmem>>) attributes {dimension_semantics = [#tpu.dimension_semantics<parallel>, #tpu.dimension_semantics<arbitrary>], iteration_bounds = array<i64: 1, 4>, scalar_prefetch = 0 : i64, scratch_operands = 4 : i64, tpu.core_type = #tpu.core_type<tc>, window_params = [{transform_indices = @transform_0, window_bounds = array<i64: 16, 32>}, {pipeline_mode = #tpu.pipeline_mode<synchronous>, transform_indices = @transform_1, window_bounds = array<i64: 32, 4>}, {transform_indices = @transform_2, window_bounds = array<i64: 1, 32, 128>}, {transform_indices = @transform_3, window_bounds = array<i64: 1, 64, 32>}, {transform_indices = @transform_4, window_bounds = array<i64: 1>}, {transform_indices = @transform_5, window_bounds = array<i64: 4>}, {transform_indices = @transform_6, window_bounds = array<i64: 4>}, {transform_indices = @transform_7, window_bounds = array<i64: 16, 32>}, {transform_indices = @transform_8, window_bounds = array<i64: 16, 4>}]} {
    %c0_i32 = arith.constant 0 : i32
    %0 = arith.cmpi eq, %arg1, %c0_i32 : i32
    %1 = arith.extui %0 : i1 to i32
    %c0_i32_0 = arith.constant 0 : i32
    %2 = arith.cmpi ne, %1, %c0_i32_0 : i32
    scf.if %2 {
      %c0_30 = arith.constant 0 : index
      %c0_31 = arith.constant 0 : index
      %75 = vector.load %arg2[%c0_30, %c0_31] : memref<16x32xf32, #tpu.memory_space<vmem>>, vector<16x32xf32>
      %76 = arith.mulf %75, %75 : vector<16x32xf32>
      %cst_32 = arith.constant dense<0.000000e+00> : vector<16xf32>
      %77 = vector.multi_reduction <add>, %76, %cst_32 [1] : vector<16x32xf32> to vector<16xf32>
      %78 = vector.shape_cast %77 : vector<16xf32> to vector<16x1xf32>
      %cst_33 = arith.constant 3.200000e+01 : f32
      %79 = vector.broadcast %cst_33 : f32 to vector<16x1xf32>
      %80 = arith.divf %78, %79 : vector<16x1xf32>
      %cst_34 = arith.constant 9.99999993E-9 : f32
      %81 = vector.broadcast %cst_34 : f32 to vector<16x1xf32>
      %82 = arith.addf %80, %81 : vector<16x1xf32>
      %83 = math.rsqrt %82 : vector<16x1xf32>
      %84 = vector.broadcast %83 : vector<16x1xf32> to vector<16x32xf32>
      %85 = arith.mulf %75, %84 : vector<16x32xf32>
      %86 = math.absf %85 : vector<16x32xf32>
      %cst_35 = arith.constant dense<0xFF800000> : vector<16xf32>
      %87 = vector.multi_reduction <maximumf>, %86, %cst_35 [1] : vector<16x32xf32> to vector<16xf32>
      %88 = vector.shape_cast %87 : vector<16xf32> to vector<16x1xf32>
      %cst_36 = arith.constant 9.99999974E-6 : f32
      %89 = vector.broadcast %cst_36 : f32 to vector<16x1xf32>
      %90 = arith.maximumf %88, %89 : vector<16x1xf32>
      %cst_37 = arith.constant 1.270000e+02 : f32
      %91 = vector.broadcast %cst_37 : f32 to vector<16x1xf32>
      %92 = arith.divf %91, %90 : vector<16x1xf32>
      %93 = vector.broadcast %92 : vector<16x1xf32> to vector<16x32xf32>
      %94 = arith.mulf %85, %93 : vector<16x32xf32>
      %95 = math.roundeven %94 : vector<16x32xf32>
      %cst_38 = arith.constant -1.280000e+02 : f32
      %cst_39 = arith.constant 1.270000e+02 : f32
      %96 = vector.broadcast %cst_38 : f32 to vector<16x32xf32>
      %97 = arith.maximumf %96, %95 : vector<16x32xf32>
      %98 = vector.broadcast %cst_39 : f32 to vector<16x32xf32>
      %99 = arith.minimumf %98, %97 : vector<16x32xf32>
      %100 = arith.truncf %99 : vector<16x32xf32> to vector<16x32xbf16>
      %cst_40 = arith.constant 0.00787401571 : f32
      %101 = vector.broadcast %cst_40 : f32 to vector<16x1xf32>
      %102 = arith.mulf %90, %101 : vector<16x1xf32>
      %c0_41 = arith.constant 0 : index
      %c0_42 = arith.constant 0 : index
      %103 = vector.load %arg11[%c0_41, %c0_42] : memref<16x32xbf16, #tpu.memory_space<vmem>>, vector<16x32xbf16>
      tpu.vector_store %arg11[%c0_41, %c0_42], %100 {strides = array<i32>} : memref<16x32xbf16, #tpu.memory_space<vmem>>, vector<16x32xbf16>,
      %c0_43 = arith.constant 0 : index
      %c0_44 = arith.constant 0 : index
      %104 = vector.load %arg12[%c0_43, %c0_44] : memref<16x1xf32, #tpu.memory_space<vmem>>, vector<16x1xf32>
      tpu.vector_store %arg12[%c0_43, %c0_44], %102 {strides = array<i32>} : memref<16x1xf32, #tpu.memory_space<vmem>>, vector<16x1xf32>,
      %c0_45 = arith.constant 0 : index
      %c0_46 = arith.constant 0 : index
      %105 = vector.load %arg3[%c0_45, %c0_46] : memref<32x4xbf16, #tpu.memory_space<vmem>>, vector<32x4xbf16>
      %cst_47 = arith.constant dense<0.000000e+00> : vector<16x4xf32>
      %106 = tpu.matmul %100, %105, %cst_47 {dimension_numbers = #tpu.dot_dimension_numbers<[1], [0], [0], [1], [0, 0, 1, 1], [], []>} : vector<16x32xbf16>, vector<32x4xbf16>, vector<16x4xf32> -> vector<16x4xf32>
      %c0_48 = arith.constant 0 : index
      %107 = memref.load %arg6[%c0_48] : memref<1xf32, #tpu.memory_space<smem>>
      %108 = vector.broadcast %107 : f32 to vector<16x1xf32>
      %109 = arith.mulf %102, %108 : vector<16x1xf32>
      %110 = vector.broadcast %109 : vector<16x1xf32> to vector<16x4xf32>
      %111 = arith.mulf %106, %110 : vector<16x4xf32>
      %c0_49 = arith.constant 0 : index
      %c0_50 = arith.constant 0 : index
      %112 = vector.load %arg10[%c0_49, %c0_50] : memref<16x4xf32, #tpu.memory_space<vmem>>, vector<16x4xf32>
      tpu.vector_store %arg10[%c0_49, %c0_50], %111 {strides = array<i32>} : memref<16x4xf32, #tpu.memory_space<vmem>>, vector<16x4xf32>,
      %cst_51 = arith.constant dense<0xFF800000> : vector<16xf32>
      %113 = vector.multi_reduction <maximumf>, %111, %cst_51 [1] : vector<16x4xf32> to vector<16xf32>
      %114 = vector.shape_cast %113 : vector<16xf32> to vector<16x1xf32>
      %115 = vector.broadcast %114 : vector<16x1xf32> to vector<16x4xf32>
      %116 = arith.subf %111, %115 : vector<16x4xf32>
      %117 = math.exp %116 : vector<16x4xf32>
      %cst_52 = arith.constant dense<0.000000e+00> : vector<16xf32>
      %118 = vector.multi_reduction <add>, %117, %cst_52 [1] : vector<16x4xf32> to vector<16xf32>
      %119 = vector.shape_cast %118 : vector<16xf32> to vector<16x1xf32>
      %120 = tpu.reciprocal %119 {approx = true} : vector<16x1xf32> -> vector<16x1xf32>
      %121 = vector.broadcast %120 : vector<16x1xf32> to vector<16x4xf32>
      %122 = arith.mulf %117, %121 : vector<16x4xf32>
      %c0_53 = arith.constant 0 : index
      %c0_54 = arith.constant 0 : index
      %123 = vector.load %arg13[%c0_53, %c0_54] : memref<16x4xf32, #tpu.memory_space<vmem>>, vector<16x4xf32>
      tpu.vector_store %arg13[%c0_53, %c0_54], %122 {strides = array<i32>} : memref<16x4xf32, #tpu.memory_space<vmem>>, vector<16x4xf32>,
      %cst_55 = arith.constant 0.000000e+00 : f32
      %124 = vector.broadcast %cst_55 : f32 to vector<16x32xf32>
      %c0_56 = arith.constant 0 : index
      %c0_57 = arith.constant 0 : index
      %125 = vector.load %arg14[%c0_56, %c0_57] : memref<16x32xf32, #tpu.memory_space<vmem>>, vector<16x32xf32>
      tpu.vector_store %arg14[%c0_56, %c0_57], %124 {strides = array<i32>} : memref<16x32xf32, #tpu.memory_space<vmem>>, vector<16x32xf32>,
    } else {
    }
    %c0 = arith.constant 0 : index
    %c0_1 = arith.constant 0 : index
    %3 = vector.load %arg11[%c0, %c0_1] : memref<16x32xbf16, #tpu.memory_space<vmem>>, vector<16x32xbf16>
    %c0_2 = arith.constant 0 : index
    %c0_3 = arith.constant 0 : index
    %4 = vector.load %arg12[%c0_2, %c0_3] : memref<16x1xf32, #tpu.memory_space<vmem>>, vector<16x1xf32>
    %c0_4 = arith.constant 0 : index
    %c0_5 = arith.constant 0 : index
    %c0_6 = arith.constant 0 : index
    %5 = vector.load %arg4[%c0_4, %c0_5, %c0_6] : memref<1x32x128xbf16, #tpu.memory_space<vmem>>, vector<1x32x128xbf16>
    %6 = vector.shape_cast %5 : vector<1x32x128xbf16> to vector<32x128xbf16>
    %cst = arith.constant dense<0.000000e+00> : vector<16x128xf32>
    %7 = tpu.matmul %3, %6, %cst {dimension_numbers = #tpu.dot_dimension_numbers<[1], [0], [0], [1], [0, 0, 1, 1], [], []>} : vector<16x32xbf16>, vector<32x128xbf16>, vector<16x128xf32> -> vector<16x128xf32>
    %8 = arith.index_cast %arg1 : i32 to index
    %9 = memref.load %arg7[%8] : memref<4xf32, #tpu.memory_space<smem>>
    %10 = vector.broadcast %9 : f32 to vector<16x1xf32>
    %11 = arith.mulf %4, %10 : vector<16x1xf32>
    %12 = vector.broadcast %11 : vector<16x1xf32> to vector<16x128xf32>
    %13 = arith.mulf %7, %12 : vector<16x128xf32>
    %14 = vector.extract_strided_slice %13 {offsets = [0, 0], sizes = [16, 64], strides = [1, 1]} : vector<16x128xf32> to vector<16x64xf32>
    %15 = vector.extract_strided_slice %13 {offsets = [0, 64], sizes = [16, 64], strides = [1, 1]} : vector<16x128xf32> to vector<16x64xf32>
    %16 = arith.negf %14 : vector<16x64xf32>
    %17 = math.exp %16 : vector<16x64xf32>
    %cst_7 = arith.constant 1.000000e+00 : f32
    %18 = vector.broadcast %cst_7 : f32 to vector<16x64xf32>
    %19 = arith.addf %18, %17 : vector<16x64xf32>
    %20 = arith.divf %18, %19 : vector<16x64xf32>
    %21 = arith.mulf %14, %20 : vector<16x64xf32>
    %22 = arith.mulf %21, %15 : vector<16x64xf32>
    %23 = arith.mulf %22, %22 : vector<16x64xf32>
    %cst_8 = arith.constant dense<0.000000e+00> : vector<16xf32>
    %24 = vector.multi_reduction <add>, %23, %cst_8 [1] : vector<16x64xf32> to vector<16xf32>
    %25 = vector.shape_cast %24 : vector<16xf32> to vector<16x1xf32>
    %cst_9 = arith.constant 6.400000e+01 : f32
    %26 = vector.broadcast %cst_9 : f32 to vector<16x1xf32>
    %27 = arith.divf %25, %26 : vector<16x1xf32>
    %cst_10 = arith.constant 9.99999993E-9 : f32
    %28 = vector.broadcast %cst_10 : f32 to vector<16x1xf32>
    %29 = arith.addf %27, %28 : vector<16x1xf32>
    %30 = math.rsqrt %29 : vector<16x1xf32>
    %31 = vector.broadcast %30 : vector<16x1xf32> to vector<16x64xf32>
    %32 = arith.mulf %22, %31 : vector<16x64xf32>
    %33 = math.absf %32 : vector<16x64xf32>
    %cst_11 = arith.constant dense<0xFF800000> : vector<16xf32>
    %34 = vector.multi_reduction <maximumf>, %33, %cst_11 [1] : vector<16x64xf32> to vector<16xf32>
    %35 = vector.shape_cast %34 : vector<16xf32> to vector<16x1xf32>
    %cst_12 = arith.constant 9.99999974E-6 : f32
    %36 = vector.broadcast %cst_12 : f32 to vector<16x1xf32>
    %37 = arith.maximumf %35, %36 : vector<16x1xf32>
    %cst_13 = arith.constant 1.270000e+02 : f32
    %38 = vector.broadcast %cst_13 : f32 to vector<16x1xf32>
    %39 = arith.divf %38, %37 : vector<16x1xf32>
    %40 = vector.broadcast %39 : vector<16x1xf32> to vector<16x64xf32>
    %41 = arith.mulf %32, %40 : vector<16x64xf32>
    %42 = math.roundeven %41 : vector<16x64xf32>
    %cst_14 = arith.constant -1.280000e+02 : f32
    %cst_15 = arith.constant 1.270000e+02 : f32
    %43 = vector.broadcast %cst_14 : f32 to vector<16x64xf32>
    %44 = arith.maximumf %43, %42 : vector<16x64xf32>
    %45 = vector.broadcast %cst_15 : f32 to vector<16x64xf32>
    %46 = arith.minimumf %45, %44 : vector<16x64xf32>
    %47 = arith.truncf %46 : vector<16x64xf32> to vector<16x64xbf16>
    %cst_16 = arith.constant 0.00787401571 : f32
    %48 = vector.broadcast %cst_16 : f32 to vector<16x1xf32>
    %49 = arith.mulf %37, %48 : vector<16x1xf32>
    %c0_17 = arith.constant 0 : index
    %c0_18 = arith.constant 0 : index
    %c0_19 = arith.constant 0 : index
    %50 = vector.load %arg5[%c0_17, %c0_18, %c0_19] : memref<1x64x32xbf16, #tpu.memory_space<vmem>>, vector<1x64x32xbf16>
    %51 = vector.shape_cast %50 : vector<1x64x32xbf16> to vector<64x32xbf16>
    %cst_20 = arith.constant dense<0.000000e+00> : vector<16x32xf32>
    %52 = tpu.matmul %47, %51, %cst_20 {dimension_numbers = #tpu.dot_dimension_numbers<[1], [0], [0], [1], [0, 0, 1, 1], [], []>} : vector<16x64xbf16>, vector<64x32xbf16>, vector<16x32xf32> -> vector<16x32xf32>
    %53 = arith.index_cast %arg1 : i32 to index
    %54 = memref.load %arg8[%53] : memref<4xf32, #tpu.memory_space<smem>>
    %55 = vector.broadcast %54 : f32 to vector<16x1xf32>
    %56 = arith.mulf %49, %55 : vector<16x1xf32>
    %57 = vector.broadcast %56 : vector<16x1xf32> to vector<16x32xf32>
    %58 = arith.mulf %52, %57 : vector<16x32xf32>
    %59 = tpu.iota {dimensions = array<i32: 1>} : vector<16x4xi32>
    %60 = vector.broadcast %arg1 : i32 to vector<16x4xi32>
    %61 = arith.cmpi eq, %59, %60 : vector<16x4xi32>
    %c0_21 = arith.constant 0 : index
    %c0_22 = arith.constant 0 : index
    %62 = vector.load %arg13[%c0_21, %c0_22] : memref<16x4xf32, #tpu.memory_space<vmem>>, vector<16x4xf32>
    %cst_23 = arith.constant 0.000000e+00 : f32
    %63 = vector.broadcast %cst_23 : f32 to vector<16x4xf32>
    %64 = arith.select %61, %62, %63 : vector<16x4xi1>, vector<16x4xf32>
    %cst_24 = arith.constant dense<0.000000e+00> : vector<16xf32>
    %65 = vector.multi_reduction <add>, %64, %cst_24 [1] : vector<16x4xf32> to vector<16xf32>
    %66 = vector.shape_cast %65 : vector<16xf32> to vector<16x1xf32>
    %c0_25 = arith.constant 0 : index
    %c0_26 = arith.constant 0 : index
    %67 = vector.load %arg14[%c0_25, %c0_26] : memref<16x32xf32, #tpu.memory_space<vmem>>, vector<16x32xf32>
    %68 = vector.broadcast %66 : vector<16x1xf32> to vector<16x32xf32>
    %69 = arith.mulf %68, %58 : vector<16x32xf32>
    %70 = arith.addf %67, %69 : vector<16x32xf32>
    %c0_27 = arith.constant 0 : index
    %c0_28 = arith.constant 0 : index
    %71 = vector.load %arg14[%c0_27, %c0_28] : memref<16x32xf32, #tpu.memory_space<vmem>>, vector<16x32xf32>
    tpu.vector_store %arg14[%c0_27, %c0_28], %70 {strides = array<i32>} : memref<16x32xf32, #tpu.memory_space<vmem>>, vector<16x32xf32>,
    %c3_i32 = arith.constant 3 : i32
    %72 = arith.cmpi eq, %arg1, %c3_i32 : i32
    %73 = arith.extui %72 : i1 to i32
    %c0_i32_29 = arith.constant 0 : i32
    %74 = arith.cmpi ne, %73, %c0_i32_29 : i32
    scf.if %74 {
      %c0_30 = arith.constant 0 : index
      %c0_31 = arith.constant 0 : index
      %75 = vector.load %arg14[%c0_30, %c0_31] : memref<16x32xf32, #tpu.memory_space<vmem>>, vector<16x32xf32>
      %c0_32 = arith.constant 0 : index
      %c0_33 = arith.constant 0 : index
      %76 = vector.load %arg9[%c0_32, %c0_33] : memref<16x32xf32, #tpu.memory_space<vmem>>, vector<16x32xf32>
      tpu.vector_store %arg9[%c0_32, %c0_33], %75 {strides = array<i32>} : memref<16x32xf32, #tpu.memory_space<vmem>>, vector<16x32xf32>,
    } else {
    }
    return
  }
  func.func @transform_0(%arg0: i32, %arg1: i32) -> (i32, i32) {
    %c0_i32 = arith.constant 0 : i32
    %c0_i32_0 = arith.constant 0 : i32
    return %arg0, %c0_i32 : i32, i32
  }
  func.func @transform_1(%arg0: i32, %arg1: i32) -> (i32, i32) {
    %c0_i32 = arith.constant 0 : i32
    %c0_i32_0 = arith.constant 0 : i32
    %c0_i32_1 = arith.constant 0 : i32
    return %c0_i32, %c0_i32_0 : i32, i32
  }
  func.func @transform_2(%arg0: i32, %arg1: i32) -> (i32, i32, i32) {
    %c0_i32 = arith.constant 0 : i32
    %c0_i32_0 = arith.constant 0 : i32
    %c0_i32_1 = arith.constant 0 : i32
    return %arg1, %c0_i32, %c0_i32_0 : i32, i32, i32
  }
  func.func @transform_3(%arg0: i32, %arg1: i32) -> (i32, i32, i32) {
    %c0_i32 = arith.constant 0 : i32
    %c0_i32_0 = arith.constant 0 : i32
    %c0_i32_1 = arith.constant 0 : i32
    return %arg1, %c0_i32, %c0_i32_0 : i32, i32, i32
  }
  func.func @transform_4(%arg0: i32, %arg1: i32) -> i32 {
    %c0_i32 = arith.constant 0 : i32
    %c0_i32_0 = arith.constant 0 : i32
    return %c0_i32 : i32
  }
  func.func @transform_5(%arg0: i32, %arg1: i32) -> i32 {
    %c0_i32 = arith.constant 0 : i32
    %c0_i32_0 = arith.constant 0 : i32
    return %c0_i32 : i32
  }
  func.func @transform_6(%arg0: i32, %arg1: i32) -> i32 {
    %c0_i32 = arith.constant 0 : i32
    %c0_i32_0 = arith.constant 0 : i32
    return %c0_i32 : i32
  }
  func.func @transform_7(%arg0: i32, %arg1: i32) -> (i32, i32) {
    %c0_i32 = arith.constant 0 : i32
    %c0_i32_0 = arith.constant 0 : i32
    return %arg0, %c0_i32 : i32, i32
  }
  func.func @transform_8(%arg0: i32, %arg1: i32) -> (i32, i32) {
    %c0_i32 = arith.constant 0 : i32
    %c0_i32_0 = arith.constant 0 : i32
    return %arg0, %c0_i32 : i32, i32
  }
}

</mosaic_0001>

<llo_original>
// kernel: tpu_custom_call.1
$region0: #{tpu_custom_call.1}
  #allocation0 [shape = 'u32[]', space=smem, size = 0x4, offset = 0x4, fixed_abs, tag = 'smem constant byte address 0x4 - core index']
  #allocation1 [shape = 'u32[144,128]{1,0:T(1,128)}', space=vmem, size = 0x12000, scoped, tag = 'internal scratch']
  #allocation2 [shape = 'bf16[16,32]{1,0:T(16,128)(2,1)}', space=vmem, size = 0x1000, scoped, tag = 'scratch operand']
  #allocation3 [shape = 'f32[16,1]{1,0:T(8,128)}', space=vmem, size = 0x2000, scoped, tag = 'scratch operand']
  #allocation4 [shape = 'f32[16,4]{1,0:T(8,128)}', space=vmem, size = 0x2000, scoped, tag = 'scratch operand']
  #allocation5 [shape = 'f32[16,32]{1,0:T(8,128)}', space=vmem, size = 0x2000, scoped, tag = 'scratch operand']
  #allocation6 [shape = 'f32[1]{0:T(128)S(6)}', space=smem, size = 0x200, scoped, tag = 'scoped memory for tpu_custom_call.1']
  %s0 = inlined_call_operand.hbm [shape: f32[16,32], index: 0, kind: input, shape index: {}]
  %s1 = inlined_call_operand.hbm [shape: bf16[32,4], index: 1, kind: input, shape index: {}]
  %s2 = inlined_call_operand.hbm [shape: bf16[4,32,128], index: 2, kind: input, shape index: {}]
  %s3 = inlined_call_operand.hbm [shape: bf16[4,64,32], index: 3, kind: input, shape index: {}]
  %s4 = inlined_call_operand.<no memory space> [shape: f32[1], index: 4, kind: input, shape index: {}]
  %s5 = inlined_call_operand.hbm [shape: f32[4], index: 5, kind: input, shape index: {}]
  %s6 = inlined_call_operand.hbm [shape: f32[4], index: 6, kind: input, shape index: {}]
  %s7 = inlined_call_operand.hbm [shape: f32[16,32], index: 7, kind: output, shape index: {0}]
  %s8 = inlined_call_operand.hbm [shape: f32[16,4], index: 8, kind: output, shape index: {1}]
  %9 = xla_tuple %s7, %s8
  %s10 = sld [smem:[#allocation0]]
  $region101: #{tpu_custom_call.1} parent=0
    _
  %s12 = ssub.s32 1, %s10
  %s13 = scalar_select 0, %s12, %s10
  %14 = sst [smem:[#allocation6]] %s4
  $region1: #{tpu_custom_call.1} parent=0
    #allocation7 [shape = 'u8[8192]{0}', space=vmem, size = 0x2000, scoped, tag = 'input window, operand 0, single buffered']
    #allocation8 [shape = 's32[2]{0}', space=sflag, size = 0x8, scoped, tag = 'scoped memory for tpu_custom_call.1']
    #allocation9 [shape = 's32[2]{0}', space=sflag, size = 0x8, scoped, tag = 'scoped memory for tpu_custom_call.1']
    #allocation10 [shape = 's32[2]{0}', space=sflag, size = 0x8, scoped, tag = 'scoped memory for tpu_custom_call.1']
    #allocation11 [shape = 'u8[8192]{0}', space=vmem, size = 0x2000, scoped, tag = 'input window, operand 1, single buffered']
    #allocation12 [shape = 's32[1]{0}', space=sflag, size = 0x4, scoped, tag = 'scoped memory for tpu_custom_call.1']
    #allocation13 [shape = 'u8[16384]{0}', space=vmem, size = 0x4000, scoped, tag = 'input window, operand 2']
    #allocation14 [shape = 'u8[32768]{0}', space=vmem, size = 0x8000, scoped, tag = 'input window, operand 3']
    #allocation15 [shape = 'u8[512]{0}', space=smem, size = 0x200, scoped, tag = 'input window, operand 5, single buffered']
    #allocation16 [shape = 'u8[512]{0}', space=smem, size = 0x200, scoped, tag = 'input window, operand 6, single buffered']
    #allocation17 [shape = 's32[1]{0}', space=sflag, size = 0x4, scoped, tag = 'scoped memory for tpu_custom_call.1']
    #allocation18 [shape = 'u8[8192]{0}', space=vmem, size = 0x2000, scoped, tag = 'output window, operand 0, single buffered']
    #allocation19 [shape = 'u8[8192]{0}', space=vmem, size = 0x2000, scoped, tag = 'output window, operand 1, single buffered']
    #allocation20 [shape = 's32[1]{0}', space=sflag, size = 0x4, scoped, tag = 'scoped memory for tpu_custom_call.1']
    %15 = vsyncpa [#allocation8], 0
    %16 = vsyncpa [#allocation12], 0
    %17 = vsyncpa [#allocation10], 0
    %18 = vsyncpa [#allocation17], 0
    %19 = vsyncpa [#allocation9], 0
    %20 = vsyncpa [#allocation20], 0
    loop: start=0, step=1, limit=6
    $region2: #{tpu_custom_call.1} parent=1 // loop_pre_header
      _
    $region3: #{tpu_custom_call.1} parent=1 // loop_header
      %s22 = sphi 0, %s26
      %p23 = scmp.ge.s32.totalorder %s22, 6
      %s29 = sphi 0, %s41
      %s30 = sphi 0, %s37
      %s31 = sphi 0, %s29
      %s32 = sphi 0, %s30
      %s33 = sphi 0, %s31
      %s34 = sphi 0, %s32
      %s44 = sphi 0, %s46
      %s47 = sphi 0, %s44
      %s48 = sphi 0, %s47
      %s64 = sphi 0, %s48
      %s68 = sphi 0, %s68
      %s70 = sphi 0, %s68
      %s71 = sphi 0, %s70
      %s85 = sphi 0, %s71
      %s91 = sphi 0, %s93
      %s94 = sphi 0, %s91
      %s95 = sphi 0, %s94
      %s111 = sphi 0, %s95
      %s117 = sphi 0, %s119
      %s120 = sphi 0, %s117
      %s121 = sphi 0, %s120
      %s137 = sphi 0, %s121
      %s141 = sphi 0, %s141
      %s143 = sphi 0, %s141
      %s144 = sphi 0, %s143
      %s158 = sphi 0, %s144
      %s162 = sphi 0, %s162
      %s164 = sphi 0, %s162
      %s165 = sphi 0, %s164
      %s179 = sphi 0, %s165
      %s183 = sphi 0, %s183
      %s185 = sphi 0, %s183
      %s186 = sphi 0, %s185
      %s200 = sphi 0, %s186
      %s206 = sphi 0, %s208
      %s209 = sphi 0, %s206
      %s210 = sphi 0, %s209
      %s226 = sphi 0, %s210
      %s232 = sphi 0, %s234
      %s235 = sphi 0, %s232
      %s236 = sphi 0, %s235
      %s252 = sphi 0, %s236
    $region4: #{tpu_custom_call.1} parent=1 // loop_header_branch
      %25 = sbr.rel (%p23) target = $region8
    $region5: #{tpu_custom_call.1} parent=1 // loop_body
      %s27 = ssub.s32 %s22, 1
      %s28 = ssub.s32 %s22, 2
      %s35 = sadd.s32 1, %s30
      %p36 = scmp.ge.s32.totalorder %s35, 4
      %s37 = scalar_select %p36, 0, %s35
      %s38 = sadd.s32 1, %s29
      %s39 = scalar_select %p36, %s38, %s29
      %p40 = scmp.ge.s32.totalorder %s39, 1
      %s41 = scalar_select %p40, 0, %s39
      %s42 = ssub.s32 %s29, %s41
      %p43 = scmp.eq.s32.totalorder %s42, 0
      %s45 = sadd.s32 %s44, 1
      %s46 = scalar_select %p43, %s44, %s45
      %p49 = pneg %p43
      %p50 = scmp.eq.s32.totalorder %s22, 3
      %p51 = por %p49, %p50
      %p52 = scmp.ne.s32.totalorder %s44, %s47
      %p53 = scmp.eq.s32.totalorder %s22, 0
      %p54 = por %p52, %p53
      %p55 = scmp.ne.s32.totalorder %s44, %s47
      %p56 = scmp.eq.s32.totalorder %s27, 3
      %p57 = por %p55, %p56
      %p58 = scmp.ne.s32.totalorder %s47, %s48
      %p59 = scmp.eq.s32.totalorder %s27, 0
      %p60 = por %p58, %p59
      %p61 = scmp.ne.s32.totalorder %s47, %s48
      %p62 = scmp.eq.s32.totalorder %s28, 3
      %p63 = por %p61, %p62
      %p65 = scmp.ne.s32.totalorder %s48, %s64
      %p66 = scmp.eq.s32.totalorder %s28, 0
      %p67 = por %p65, %p66
      %s69 = sadd.s32 %s68, 1
      %p72 = scmp.eq.s32.totalorder %s22, 3
      %p73 = scmp.ne.s32.totalorder %s68, %s70
      %p74 = scmp.eq.s32.totalorder %s22, 0
      %p75 = por %p73, %p74
      %p76 = scmp.ne.s32.totalorder %s68, %s70
      %p77 = scmp.eq.s32.totalorder %s27, 3
      %p78 = por %p76, %p77
      %p79 = scmp.ne.s32.totalorder %s70, %s71
      %p80 = scmp.eq.s32.totalorder %s27, 0
      %p81 = por %p79, %p80
      %p82 = scmp.ne.s32.totalorder %s70, %s71
      %p83 = scmp.eq.s32.totalorder %s28, 3
      %p84 = por %p82, %p83
      %p86 = scmp.ne.s32.totalorder %s71, %s85
      %p87 = scmp.eq.s32.totalorder %s28, 0
      %p88 = por %p86, %p87
      %s89 = ssub.s32 %s30, %s37
      %p90 = scmp.eq.s32.totalorder %s89, 0
      %s92 = sadd.s32 %s91, 1
      %s93 = scalar_select %p90, %s91, %s92
      %p96 = pneg %p90
      %p97 = scmp.eq.s32.totalorder %s22, 3
      %p98 = por %p96, %p97
      %p99 = scmp.ne.s32.totalorder %s91, %s94
      %p100 = scmp.eq.s32.totalorder %s22, 0
      %p101 = por %p99, %p100
      %p102 = scmp.ne.s32.totalorder %s91, %s94
      %p103 = scmp.eq.s32.totalorder %s27, 3
      %p104 = por %p102, %p103
      %p105 = scmp.ne.s32.totalorder %s94, %s95
      %p106 = scmp.eq.s32.totalorder %s27, 0
      %p107 = por %p105, %p106
      %p108 = scmp.ne.s32.totalorder %s94, %s95
      %p109 = scmp.eq.s32.totalorder %s28, 3
      %p110 = por %p108, %p109
      %p112 = scmp.ne.s32.totalorder %s95, %s111
      %p113 = scmp.eq.s32.totalorder %s28, 0
      %p114 = por %p112, %p113
      %s115 = ssub.s32 %s30, %s37
      %p116 = scmp.eq.s32.totalorder %s115, 0
      %s118 = sadd.s32 %s117, 1
      %s119 = scalar_select %p116, %s117, %s118
      %p122 = pneg %p116
      %p123 = scmp.eq.s32.totalorder %s22, 3
      %p124 = por %p122, %p123
      %p125 = scmp.ne.s32.totalorder %s117, %s120
      %p126 = scmp.eq.s32.totalorder %s22, 0
      %p127 = por %p125, %p126
      %p128 = scmp.ne.s32.totalorder %s117, %s120
      %p129 = scmp.eq.s32.totalorder %s27, 3
      %p130 = por %p128, %p129
      %p131 = scmp.ne.s32.totalorder %s120, %s121
      %p132 = scmp.eq.s32.totalorder %s27, 0
      %p133 = por %p131, %p132
      %p134 = scmp.ne.s32.totalorder %s120, %s121
      %p135 = scmp.eq.s32.totalorder %s28, 3
      %p136 = por %p134, %p135
      %p138 = scmp.ne.s32.totalorder %s121, %s137
      %p139 = scmp.eq.s32.totalorder %s28, 0
      %p140 = por %p138, %p139
      %s142 = sadd.s32 %s141, 1
      %p145 = scmp.eq.s32.totalorder %s22, 3
      %p146 = scmp.ne.s32.totalorder %s141, %s143
      %p147 = scmp.eq.s32.totalorder %s22, 0
      %p148 = por %p146, %p147
      %p149 = scmp.ne.s32.totalorder %s141, %s143
      %p150 = scmp.eq.s32.totalorder %s27, 3
      %p151 = por %p149, %p150
      %p152 = scmp.ne.s32.totalorder %s143, %s144
      %p153 = scmp.eq.s32.totalorder %s27, 0
      %p154 = por %p152, %p153
      %p155 = scmp.ne.s32.totalorder %s143, %s144
      %p156 = scmp.eq.s32.totalorder %s28, 3
      %p157 = por %p155, %p156
      %p159 = scmp.ne.s32.totalorder %s144, %s158
      %p160 = scmp.eq.s32.totalorder %s28, 0
      %p161 = por %p159, %p160
      %s163 = sadd.s32 %s162, 1
      %p166 = scmp.eq.s32.totalorder %s22, 3
      %p167 = scmp.ne.s32.totalorder %s162, %s164
      %p168 = scmp.eq.s32.totalorder %s22, 0
      %p169 = por %p167, %p168
      %p170 = scmp.ne.s32.totalorder %s162, %s164
      %p171 = scmp.eq.s32.totalorder %s27, 3
      %p172 = por %p170, %p171
      %p173 = scmp.ne.s32.totalorder %s164, %s165
      %p174 = scmp.eq.s32.totalorder %s27, 0
      %p175 = por %p173, %p174
      %p176 = scmp.ne.s32.totalorder %s164, %s165
      %p177 = scmp.eq.s32.totalorder %s28, 3
      %p178 = por %p176, %p177
      %p180 = scmp.ne.s32.totalorder %s165, %s179
      %p181 = scmp.eq.s32.totalorder %s28, 0
      %p182 = por %p180, %p181
      %s184 = sadd.s32 %s183, 1
      %p187 = scmp.eq.s32.totalorder %s22, 3
      %p188 = scmp.ne.s32.totalorder %s183, %s185
      %p189 = scmp.eq.s32.totalorder %s22, 0
      %p190 = por %p188, %p189
      %p191 = scmp.ne.s32.totalorder %s183, %s185
      %p192 = scmp.eq.s32.totalorder %s27, 3
      %p193 = por %p191, %p192
      %p194 = scmp.ne.s32.totalorder %s185, %s186
      %p195 = scmp.eq.s32.totalorder %s27, 0
      %p196 = por %p194, %p195
      %p197 = scmp.ne.s32.totalorder %s185, %s186
      %p198 = scmp.eq.s32.totalorder %s28, 3
      %p199 = por %p197, %p198
      %p201 = scmp.ne.s32.totalorder %s186, %s200
      %p202 = scmp.eq.s32.totalorder %s28, 0
      %p203 = por %p201, %p202
      %s204 = ssub.s32 %s29, %s41
      %p205 = scmp.eq.s32.totalorder %s204, 0
      %s207 = sadd.s32 %s206, 1
      %s208 = scalar_select %p205, %s206, %s207
      %p211 = pneg %p205
      %p212 = scmp.eq.s32.totalorder %s22, 3
      %p213 = por %p211, %p212
      %p214 = scmp.ne.s32.totalorder %s206, %s209
      %p215 = scmp.eq.s32.totalorder %s22, 0
      %p216 = por %p214, %p215
      %p217 = scmp.ne.s32.totalorder %s206, %s209
      %p218 = scmp.eq.s32.totalorder %s27, 3
      %p219 = por %p217, %p218
      %p220 = scmp.ne.s32.totalorder %s209, %s210
      %p221 = scmp.eq.s32.totalorder %s27, 0
      %p222 = por %p220, %p221
      %p223 = scmp.ne.s32.totalorder %s209, %s210
      %p224 = scmp.eq.s32.totalorder %s28, 3
      %p225 = por %p223, %p224
      %p227 = scmp.ne.s32.totalorder %s210, %s226
      %p228 = scmp.eq.s32.totalorder %s28, 0
      %p229 = por %p227, %p228
      %s230 = ssub.s32 %s29, %s41
      %p231 = scmp.eq.s32.totalorder %s230, 0
      %s233 = sadd.s32 %s232, 1
      %s234 = scalar_select %p231, %s232, %s233
      %p237 = pneg %p231
      %p238 = scmp.eq.s32.totalorder %s22, 3
      %p239 = por %p237, %p238
      %p240 = scmp.ne.s32.totalorder %s232, %s235
      %p241 = scmp.eq.s32.totalorder %s22, 0
      %p242 = por %p240, %p241
      %p243 = scmp.ne.s32.totalorder %s232, %s235
      %p244 = scmp.eq.s32.totalorder %s27, 3
      %p245 = por %p243, %p244
      %p246 = scmp.ne.s32.totalorder %s235, %s236
      %p247 = scmp.eq.s32.totalorder %s27, 0
      %p248 = por %p246, %p247
      %p249 = scmp.ne.s32.totalorder %s235, %s236
      %p250 = scmp.eq.s32.totalorder %s28, 3
      %p251 = por %p249, %p250
      %p253 = scmp.ne.s32.totalorder %s236, %s252
      %p254 = scmp.eq.s32.totalorder %s28, 0
      %p255 = por %p253, %p254
      %p256 = scmp.le.s32.totalorder 1, %s22
      %p257 = scmp.lt.s32.totalorder %s22, 5
      %p258 = pnand %p256, %p257
      %p259 = pneg %p258
      // Predicated region
      $region9: #{tpu_custom_call.1} parent=5 // pred_check
        _
      $region10: #{tpu_custom_call.1} parent=5 // pred_check_branch
        %261 = sbr.rel (%p258) target = $region12
      $region11: #{tpu_custom_call.1} parent=5 // pred_region
        %s262 = ssub.s32 %s22, 1
        // Predicated region
        $region13: #{tpu_custom_call.1} parent=11 // pred_check
          %p263 = pneg %p60
        $region14: #{tpu_custom_call.1} parent=11 // pred_check_branch
          %265 = sbr.rel (%p263) target = $region16
        $region15: #{tpu_custom_call.1} parent=11 // pred_region
          %s266 = smul.u32 2, %s31
          %s268 = ssub.s32 256, 256
          %269 = vsyncadd [#allocation8], %s268
          %s270 = smul.addr %s266, 128
          %s271 = scalar_lea.hbm %s0, %s270
          %s272 = sshll.u32 [#allocation7], 4
          %s273 = int_to_ptr.vmem [resolvable:$true] %s272
          %278 = dma.hbm_to_vmem [thread:$0]  %s271, 256, %s273, [#allocation8], 128, 128, 8
        $region16: #{tpu_custom_call.1} parent=11 // pred_fallthru
          _
        // Predicated region
        $region17: #{tpu_custom_call.1} parent=11 // pred_check
          %p279 = pneg %p81
        $region18: #{tpu_custom_call.1} parent=11 // pred_check_branch
          %281 = sbr.rel (%p279) target = $region20
        $region19: #{tpu_custom_call.1} parent=11 // pred_region
          %s283 = ssub.s32 256, 256
          %284 = vsyncadd [#allocation12], %s283
          %s285 = sshll.u32 [#allocation11], 4
          %s286 = int_to_ptr.vmem [resolvable:$true] %s285
          %291 = dma.hbm_to_vmem [thread:$0]  %s1, 256, %s286, [#allocation12], 64, 64, 4
        $region20: #{tpu_custom_call.1} parent=11 // pred_fallthru
          _
        // Predicated region
        $region21: #{tpu_custom_call.1} parent=11 // pred_check
          %p292 = pneg %p154
        $region22: #{tpu_custom_call.1} parent=11 // pred_check_branch
          %294 = sbr.rel (%p292) target = $region24
        $region23: #{tpu_custom_call.1} parent=11 // pred_region
          _
        $region24: #{tpu_custom_call.1} parent=11 // pred_fallthru
          _
        // Predicated region
        $region25: #{tpu_custom_call.1} parent=11 // pred_check
          %p295 = pneg %p175
        $region26: #{tpu_custom_call.1} parent=11 // pred_check_branch
          %297 = sbr.rel (%p295) target = $region28
        $region27: #{tpu_custom_call.1} parent=11 // pred_region
          %s299 = ssub.s32 16, 16
          %300 = vsyncadd [#allocation10], %s299
          %303 = dma.hbm_to_smem %s5, 16, [#allocation15], [#allocation10]
        $region28: #{tpu_custom_call.1} parent=11 // pred_fallthru
          _
        // Predicated region
        $region29: #{tpu_custom_call.1} parent=11 // pred_check
          %p304 = pneg %p196
        $region30: #{tpu_custom_call.1} parent=11 // pred_check_branch
          %306 = sbr.rel (%p304) target = $region32
        $region31: #{tpu_custom_call.1} parent=11 // pred_region
          %s308 = ssub.s32 16, 16
          %309 = vsyncadd [#allocation17], %s308
          %312 = dma.hbm_to_smem %s6, 16, [#allocation16], [#allocation17]
        $region32: #{tpu_custom_call.1} parent=11 // pred_fallthru
          _
      $region12: #{tpu_custom_call.1} parent=5 // pred_fallthru
        _
      %p313 = scmp.lt.s32.totalorder %s22, 4
      // Predicated region
      $region33: #{tpu_custom_call.1} parent=5 // pred_check
        %p314 = pneg %p313
      $region34: #{tpu_custom_call.1} parent=5 // pred_check_branch
        %316 = sbr.rel (%p314) target = $region36
      $region35: #{tpu_custom_call.1} parent=5 // pred_region
        // Predicated region
        $region37: #{tpu_custom_call.1} parent=35 // pred_check
          %p317 = pneg %p101
        $region38: #{tpu_custom_call.1} parent=35 // pred_check_branch
          %319 = sbr.rel (%p317) target = $region40
        $region39: #{tpu_custom_call.1} parent=35 // pred_region
          %s320 = sand.u32 %s22, 1
          %s321 = scalar_lea.sflag [#allocation8], %s320
          %s322 = sand.u32 %s91, 1
          %s323 = smul.addr %s322, 16
          %s324 = scalar_lea.vmem [#allocation13], %s323
          %s326 = ssub.s32 256, 256
          %327 = vsyncadd %s321, %s326
          %s328 = smul.addr %s30, 4
          %s329 = smul.addr %s328, 64
          %s330 = scalar_lea.hbm %s2, %s329
          %s331 = sshll.u32 %s324, 4
          %s332 = int_to_ptr.vmem [resolvable:$true] %s331
          %337 = dma.hbm_to_vmem [thread:$0]  %s330, 256, %s332, %s321, 64, 64, 4
        $region40: #{tpu_custom_call.1} parent=35 // pred_fallthru
          _
        // Predicated region
        $region41: #{tpu_custom_call.1} parent=35 // pred_check
          %p338 = pneg %p127
        $region42: #{tpu_custom_call.1} parent=35 // pred_check_branch
          %340 = sbr.rel (%p338) target = $region44
        $region43: #{tpu_custom_call.1} parent=35 // pred_region
          %s341 = sand.u32 %s22, 1
          %s342 = scalar_lea.sflag [#allocation8], %s341
          %s343 = sand.u32 %s117, 1
          %s344 = smul.addr %s343, 32
          %s345 = scalar_lea.vmem [#allocation14], %s344
          %s347 = ssub.s32 512, 512
          %348 = vsyncadd %s342, %s347
          %s349 = smul.addr %s30, 8
          %s350 = smul.addr %s349, 64
          %s351 = scalar_lea.hbm %s3, %s350
          %s352 = sshll.u32 %s345, 4
          %s353 = int_to_ptr.vmem [resolvable:$true] %s352
          %358 = dma.hbm_to_vmem [thread:$0]  %s351, 512, %s353, %s342, 64, 64, 4
        $region44: #{tpu_custom_call.1} parent=35 // pred_fallthru
          _
      $region36: #{tpu_custom_call.1} parent=5 // pred_fallthru
        _
      %p359 = scmp.le.s32.totalorder 1, %s22
      %p360 = scmp.lt.s32.totalorder %s22, 5
      %p361 = pnand %p359, %p360
      %p362 = pneg %p361
      // Predicated region
      $region45: #{tpu_custom_call.1} parent=5 // pred_check
        _
      $region46: #{tpu_custom_call.1} parent=5 // pred_check_branch
        %364 = sbr.rel (%p361) target = $region48
      $region47: #{tpu_custom_call.1} parent=5 // pred_region
        %s365 = ssub.s32 %s22, 1
        // Predicated region
        $region49: #{tpu_custom_call.1} parent=47 // pred_check
          %p366 = pneg %p60
        $region50: #{tpu_custom_call.1} parent=47 // pred_check_branch
          %368 = sbr.rel (%p366) target = $region52
        $region51: #{tpu_custom_call.1} parent=47 // pred_region
          %369 = dma.done [#allocation8], 256
        $region52: #{tpu_custom_call.1} parent=47 // pred_fallthru
          _
        // Predicated region
        $region53: #{tpu_custom_call.1} parent=47 // pred_check
          %p370 = pneg %p81
        $region54: #{tpu_custom_call.1} parent=47 // pred_check_branch
          %372 = sbr.rel (%p370) target = $region56
        $region55: #{tpu_custom_call.1} parent=47 // pred_region
          %373 = dma.done [#allocation12], 256
        $region56: #{tpu_custom_call.1} parent=47 // pred_fallthru
          _
        %s374 = sand.u32 %s27, 1
        %s375 = scalar_lea.sflag [#allocation8], %s374
        %s376 = sand.u32 %s94, 1
        %s377 = smul.addr %s376, 16
        %s378 = scalar_lea.vmem [#allocation13], %s377
        // Predicated region
        $region57: #{tpu_custom_call.1} parent=47 // pred_check
          %p379 = pneg %p107
        $region58: #{tpu_custom_call.1} parent=47 // pred_check_branch
          %381 = sbr.rel (%p379) target = $region60
        $region59: #{tpu_custom_call.1} parent=47 // pred_region
          %382 = dma.done %s375, 256
        $region60: #{tpu_custom_call.1} parent=47 // pred_fallthru
          _
        %s383 = sand.u32 %s27, 1
        %s384 = scalar_lea.sflag [#allocation8], %s383
        %s385 = sand.u32 %s120, 1
        %s386 = smul.addr %s385, 32
        %s387 = scalar_lea.vmem [#allocation14], %s386
        // Predicated region
        $region61: #{tpu_custom_call.1} parent=47 // pred_check
          %p388 = pneg %p133
        $region62: #{tpu_custom_call.1} parent=47 // pred_check_branch
          %390 = sbr.rel (%p388) target = $region64
        $region63: #{tpu_custom_call.1} parent=47 // pred_region
          %391 = dma.done %s384, 512
        $region64: #{tpu_custom_call.1} parent=47 // pred_fallthru
          _
        // Predicated region
        $region65: #{tpu_custom_call.1} parent=47 // pred_check
          %p392 = pneg %p175
        $region66: #{tpu_custom_call.1} parent=47 // pred_check_branch
          %394 = sbr.rel (%p392) target = $region68
        $region67: #{tpu_custom_call.1} parent=47 // pred_region
          %395 = dma.done [#allocation10], 16
        $region68: #{tpu_custom_call.1} parent=47 // pred_fallthru
          _
        // Predicated region
        $region69: #{tpu_custom_call.1} parent=47 // pred_check
          %p396 = pneg %p196
        $region70: #{tpu_custom_call.1} parent=47 // pred_check_branch
          %398 = sbr.rel (%p396) target = $region72
        $region71: #{tpu_custom_call.1} parent=47 // pred_region
          %399 = dma.done [#allocation17], 16
        $region72: #{tpu_custom_call.1} parent=47 // pred_fallthru
          _
        %400 = sfence
        %p401 = pneg %p60
        %p402 = pneg %p57
        %p403 = pneg %p81
        %p404 = pneg %p78
        %s405 = sand.u32 %s27, 1
        %s406 = scalar_lea.sflag [#allocation8], %s405
        %s407 = sand.u32 %s94, 1
        %s408 = smul.addr %s407, 16
        %s409 = scalar_lea.vmem [#allocation13], %s408
        %p410 = pneg %p107
        %p411 = pneg %p104
        %s412 = sand.u32 %s27, 1
        %s413 = scalar_lea.sflag [#allocation8], %s412
        %s414 = sand.u32 %s120, 1
        %s415 = smul.addr %s414, 32
        %s416 = scalar_lea.vmem [#allocation14], %s415
        %p417 = pneg %p133
        %p418 = pneg %p130
        %p419 = pneg %p154
        %p420 = pneg %p151
        %p421 = pneg %p175
        %p422 = pneg %p172
        %p423 = pneg %p196
        %p424 = pneg %p193
        %p425 = pneg %p222
        %p426 = pneg %p219
        %p427 = pneg %p248
        %p428 = pneg %p245
        %s429 = smul.u32 2, %s31
        %s430 = smul.u32 2, %s31
        %s431 = smul.u32 2, %s31
        %p433 = scmp.eq.s32.totalorder %s32, 0
        // Predicated region
        $region73: #{tpu_custom_call.1} parent=47 // pred_check
          %p434 = pneg %p433
        $region74: #{tpu_custom_call.1} parent=47 // pred_check_branch
          %436 = sbr.rel (%p434) target = $region76
        $region75: #{tpu_custom_call.1} parent=47 // pred_region
          %v437 = vld [vmem:[#allocation7] sm:$0xff]
          %v438 = vld [vmem:[#allocation7 + $0x8] sm:$0xff]
          %v439 = vmul.f32 %v437, %v437
          %v440 = vmul.f32 %v438, %v438
          %vm441 = vcmask 261120
          %v442 = vsel %vm441, %v439, 0.0
          %443 = vadd.xlane.f32.xlu0 %v442
          %v444 = vpop.xlane.xlu0 %443
          %v445 = vsel %vm441, %v440, 0.0
          %446 = vadd.xlane.f32.xlu0 %v445
          %v447 = vpop.xlane.xlu0 %446
          %v448 = vrcp.pop 32.0
          %v449 = vmul.f32 %v444, %v448
          %v450 = vmul.f32 %v447, %v448
          %v451 = vadd.f32 %v449, 1e-08
          %v452 = vadd.f32 %v450, 1e-08
          %v453 = vrsqrt.pop %v451
          %v454 = vrsqrt.pop %v452
          %v455 = vmul.f32 %v437, %v453
          %v456 = vmul.f32 %v438, %v454
          %v457 = vand.u32 2147483647, %v455
          %v458 = vand.u32 2147483647, %v456
          %v459 = vsel %vm441, %v457, -inf
          %460 = vmax.xlane.f32.xlu0 %v459
          %v461 = vpop.xlane.xlu0 %460
          %v462 = vsel %vm441, %v458, -inf
          %463 = vmax.xlane.f32.xlu0 %v462
          %v464 = vpop.xlane.xlu0 %463
          %v465 = vmax.f32 %v461, 1e-05
          %v466 = vmax.f32 %v464, 1e-05
          %v467 = vrcp.pop %v465
          %v468 = vmul.f32 127.0, %v467
          %v469 = vrcp.pop %v466
          %v470 = vmul.f32 127.0, %v469
          %v471 = vmul.f32 %v455, %v468
          %v472 = vmul.f32 %v456, %v470
          %v473 = vround.ne.pseudo %v471
          %v474 = vround.ne.pseudo %v472
          %v475 = vmax.f32 %v473, -128.0
          %v476 = vmax.f32 %v474, -128.0
          %v477 = vmin.f32 %v475, 127.0
          %v478 = vmin.f32 %v476, 127.0
          %v479 = vpack.c.bf16 %v478, %v477
          %v480 = vmul.f32 %v465, 0.007874016
          %v481 = vmul.f32 %v466, 0.007874016
          %482 = vst.msk [vmem:[#allocation2] sm:$0xff] %vm441, %v479
          %vm483 = vcmask 7168
          %484 = vst.msk [vmem:[#allocation3] sm:$0xff] %vm483, %v480
          %485 = vst.msk [vmem:[#allocation3 + $0x8] sm:$0xff] %vm483, %v481
          %v486 = vld [vmem:[#allocation11] sm:$0xf]
          %v487 = vld [vmem:[#allocation11 + $0x4] sm:$0xf]
          %v488 = vld [vmem:[#allocation11 + $0x8] sm:$0xf]
          %v489 = vld [vmem:[#allocation11 + $0xc] sm:$0xf]
          %v494 = vunpack.c.l.b16 %v486
          %v495 = vunpack.c.l.b16 %v487
          %v496 = vunpack.c.l.b16 %v488
          %v497 = vunpack.c.l.b16 %v489
          %v498 = vpack.c.b16 %v495, %v494
          %v499 = vpack.c.b16 %v497, %v496
          %v503 = vsel %vm441, %v479, 0
          %505 = vmatprep.subr.bf16.mxu0 0
          %506 = vmatpush1.bf16.msra.mxu0 %v498
          %507 = vmatprep.subr.bf16.mxu0 0
          %508 = vmatpush1.bf16.msra.mxu0 %v499
          %509 = vmatprep.subr.bf16.mxu0 0
          %510 = vmatpush1.bf16.msra.mxu0 0
          %511 = vmatprep.subr.bf16.mxu0 0
          %512 = vmatpush1.bf16.msra.mxu0 0
          %513 = vmatprep.subr.bf16.mxu0 0
          %514 = vmatpush1.bf16.msra.mxu0 0
          %515 = vmatprep.subr.bf16.mxu0 0
          %516 = vmatpush1.bf16.msra.mxu0 0
          %517 = vmatprep.subr.bf16.mxu0 0
          %518 = vmatpush1.bf16.msra.mxu0 0
          %519 = vmatprep.subr.bf16.mxu0 0
          %520 = vmatpush1.bf16.msra.mxu0 0
          %521 = vmatprep.subr.bf16.mxu0 0
          %522 = vmatpush1.bf16.msra.mxu0 0
          %523 = vmatprep.subr.bf16.mxu0 0
          %524 = vmatpush1.bf16.msra.mxu0 0
          %525 = vmatprep.subr.bf16.mxu0 0
          %526 = vmatpush1.bf16.msra.mxu0 0
          %527 = vmatprep.subr.bf16.mxu0 0
          %528 = vmatpush1.bf16.msra.mxu0 0
          %529 = vmatprep.subr.bf16.mxu0 0
          %530 = vmatpush1.bf16.msra.mxu0 0
          %531 = vmatprep.subr.bf16.mxu0 0
          %532 = vmatpush1.bf16.msra.mxu0 0
          %533 = vmatprep.subr.bf16.mxu0 0
          %534 = vmatpush1.bf16.msra.mxu0 0
          %535 = vmatprep.subr.bf16.mxu0 0
          %536 = vmatpush1.bf16.msra.mxu0 0
          %537 = vmatprep.mubr.bf16.mxu0 0
          %538 = vmatmul.mubr.bf16.gmra.mrb[0].mxu0 %v503
          %v539 = vpop.f32.mrb[0].mxu0
          %v540 = vadd.f32 0.0, %v539
          %v541 = vpop.f32.mrb[0].mxu0
          %v542 = vpop.f32.mrb[0].mxu0
          %v543 = vadd.f32 0.0, %v542
          %v544 = vpop.f32.mrb[0].mxu0
          %545 = vdwg.mxu0
          %s546 = sld [smem:[#allocation6]]
          %v547 = vstv %s546
          %v548 = vmul.f32 %v480, %v547
          %v549 = vmul.f32 %v481, %v547
          %v550 = vmul.f32 %v540, %v548
          %v551 = vmul.f32 %v543, %v549
          %vm552 = vcmask 31744
          %553 = vst.msk [vmem:[#allocation19] sm:$0xff] %vm552, %v550
          %554 = vst.msk [vmem:[#allocation19 + $0x8] sm:$0xff] %vm552, %v551
          %v555 = vsel %vm552, %v550, -inf
          %556 = vmax.xlane.f32.xlu0 %v555
          %v557 = vpop.xlane.xlu0 %556
          %v558 = vsel %vm552, %v551, -inf
          %559 = vmax.xlane.f32.xlu0 %v558
          %v560 = vpop.xlane.xlu0 %559
          %v561 = vsub.f32 %v550, %v557
          %v562 = vsub.f32 %v551, %v560
          %v563 = vmul.f32 %v561, 1.442695
          %v564 = vpow.pop %v563
          %v565 = vmul.f32 %v562, 1.442695
          %v566 = vpow.pop %v565
          %v567 = vsel %vm552, %v564, 0.0
          %568 = vadd.xlane.f32.xlu0 %v567
          %v569 = vpop.xlane.xlu0 %568
          %v570 = vsel %vm552, %v566, 0.0
          %571 = vadd.xlane.f32.xlu0 %v570
          %v572 = vpop.xlane.xlu0 %571
          %v573 = vrcp.pop %v569
          %v574 = vrcp.pop %v572
          %v575 = vmul.f32 %v564, %v573
          %v576 = vmul.f32 %v566, %v574
          %577 = vst.msk [vmem:[#allocation4] sm:$0xff] %vm552, %v575
          %578 = vst.msk [vmem:[#allocation4 + $0x8] sm:$0xff] %vm552, %v576
          %579 = vst.msk [vmem:[#allocation5] sm:$0xff] %vm441, 0.0
          %580 = vst.msk [vmem:[#allocation5 + $0x8] sm:$0xff] %vm441, 0.0
        $region76: #{tpu_custom_call.1} parent=47 // pred_fallthru
          _
        %v581 = vld [vmem:[#allocation2] sm:$0xff]
        %v582 = vld [vmem:[#allocation3] sm:$0xff]
        %v583 = vld [vmem:[#allocation3 + $0x8] sm:$0xff]
        %v584 = vld [vmem:[%s378] sm:$0xf]
        %v585 = vld [vmem:[%s378 + $0x4] sm:$0xf]
        %v586 = vld [vmem:[%s378 + $0x8] sm:$0xf]
        %v587 = vld [vmem:[%s378 + $0xc] sm:$0xf]
        %v592 = vunpack.c.l.b16 %v584
        %v593 = vunpack.c.l.b16 %v585
        %v594 = vunpack.c.l.b16 %v586
        %v595 = vunpack.c.l.b16 %v587
        %v596 = vpack.c.b16 %v593, %v592
        %v597 = vpack.c.b16 %v595, %v594
        %vm600 = vcmask 261120
        %v602 = vsel %vm600, %v581, 0
        %604 = vmatprep.subr.bf16.mxu0 0
        %605 = vmatpush1.bf16.msra.mxu0 %v596
        %606 = vmatprep.subr.bf16.mxu0 0
        %607 = vmatpush1.bf16.msra.mxu0 %v597
        %608 = vmatprep.subr.bf16.mxu0 0
        %609 = vmatpush1.bf16.msra.mxu0 0
        %610 = vmatprep.subr.bf16.mxu0 0
        %611 = vmatpush1.bf16.msra.mxu0 0
        %612 = vmatprep.subr.bf16.mxu0 0
        %613 = vmatpush1.bf16.msra.mxu0 0
        %614 = vmatprep.subr.bf16.mxu0 0
        %615 = vmatpush1.bf16.msra.mxu0 0
        %616 = vmatprep.subr.bf16.mxu0 0
        %617 = vmatpush1.bf16.msra.mxu0 0
        %618 = vmatprep.subr.bf16.mxu0 0
        %619 = vmatpush1.bf16.msra.mxu0 0
        %620 = vmatprep.subr.bf16.mxu0 0
        %621 = vmatpush1.bf16.msra.mxu0 0
        %622 = vmatprep.subr.bf16.mxu0 0
        %623 = vmatpush1.bf16.msra.mxu0 0
        %624 = vmatprep.subr.bf16.mxu0 0
        %625 = vmatpush1.bf16.msra.mxu0 0
        %626 = vmatprep.subr.bf16.mxu0 0
        %627 = vmatpush1.bf16.msra.mxu0 0
        %628 = vmatprep.subr.bf16.mxu0 0
        %629 = vmatpush1.bf16.msra.mxu0 0
        %630 = vmatprep.subr.bf16.mxu0 0
        %631 = vmatpush1.bf16.msra.mxu0 0
        %632 = vmatprep.subr.bf16.mxu0 0
        %633 = vmatpush1.bf16.msra.mxu0 0
        %634 = vmatprep.subr.bf16.mxu0 0
        %635 = vmatpush1.bf16.msra.mxu0 0
        %636 = vmatprep.mubr.bf16.mxu0 0
        %637 = vmatmul.mubr.bf16.gmra.mrb[0].mxu0 %v602
        %v638 = vpop.f32.mrb[0].mxu0
        %v639 = vadd.f32 0.0, %v638
        %v640 = vpop.f32.mrb[0].mxu0
        %v641 = vpop.f32.mrb[0].mxu0
        %v642 = vadd.f32 0.0, %v641
        %v643 = vpop.f32.mrb[0].mxu0
        %644 = vdwg.mxu0
        %s645 = sld [smem:[#allocation15 + %s32]]
        %v646 = vstv %s645
        %v647 = vmul.f32 %v582, %v646
        %v648 = vmul.f32 %v583, %v646
        %650 = vset.pattern.permute.xlu0 0
        %651 = vperm.xlu0 %650, %v647
        %v652 = vpop.permute.xlu0 %651
        %655 = vset.pattern.permute.xlu0 0
        %656 = vperm.xlu0 %655, %v648
        %v657 = vpop.permute.xlu0 %656
        %v659 = vmul.f32 %v639, %v652
        %v660 = vmul.f32 %v642, %v657
        %v661 = vxor.u32 %v659, 2147483648
        %v662 = vxor.u32 %v660, 2147483648
        %v663 = vmul.f32 %v661, 1.442695
        %v664 = vpow.pop %v663
        %v665 = vmul.f32 %v662, 1.442695
        %v666 = vpow.pop %v665
        %v667 = vadd.f32 %v664, 1.0
        %v668 = vadd.f32 %v666, 1.0
        %v669 = vrcp.pop %v667
        %v670 = vmul.f32 1.0, %v669
        %v671 = vrcp.pop %v668
        %v672 = vmul.f32 1.0, %v671
        %v673 = vmul.f32 %v659, %v670
        %v674 = vmul.f32 %v660, %v672
        %677 = vrot.lane.b32.xlu0 %v659, 64
        %v678 = vpop.permute.xlu0 %677
        %679 = vrot.lane.b32.xlu0 %v660, 64
        %v680 = vpop.permute.xlu0 %679
        %v683 = vmul.f32 %v673, %v678
        %v684 = vmul.f32 %v674, %v680
        %v685 = vmul.f32 %v683, %v683
        %v686 = vmul.f32 %v684, %v684
        %vm687 = vcmask 523264
        %v688 = vsel %vm687, %v685, 0.0
        %689 = vadd.xlane.f32.xlu0 %v688
        %v690 = vpop.xlane.xlu0 %689
        %v691 = vsel %vm687, %v686, 0.0
        %692 = vadd.xlane.f32.xlu0 %v691
        %v693 = vpop.xlane.xlu0 %692
        %v694 = vrcp.pop 64.0
        %v695 = vmul.f32 %v690, %v694
        %v696 = vmul.f32 %v693, %v694
        %v697 = vadd.f32 %v695, 1e-08
        %v698 = vadd.f32 %v696, 1e-08
        %v699 = vrsqrt.pop %v697
        %v700 = vrsqrt.pop %v698
        %v701 = vmul.f32 %v683, %v699
        %v702 = vmul.f32 %v684, %v700
        %v703 = vand.u32 2147483647, %v701
        %v704 = vand.u32 2147483647, %v702
        %v705 = vsel %vm687, %v703, -inf
        %706 = vmax.xlane.f32.xlu0 %v705
        %v707 = vpop.xlane.xlu0 %706
        %v708 = vsel %vm687, %v704, -inf
        %709 = vmax.xlane.f32.xlu0 %v708
        %v710 = vpop.xlane.xlu0 %709
        %v711 = vmax.f32 %v707, 1e-05
        %v712 = vmax.f32 %v710, 1e-05
        %v713 = vrcp.pop %v711
        %v714 = vmul.f32 127.0, %v713
        %v715 = vrcp.pop %v712
        %v716 = vmul.f32 127.0, %v715
        %v717 = vmul.f32 %v701, %v714
        %v718 = vmul.f32 %v702, %v716
        %v719 = vround.ne.pseudo %v717
        %v720 = vround.ne.pseudo %v718
        %v721 = vmax.f32 %v719, -128.0
        %v722 = vmax.f32 %v720, -128.0
        %v723 = vmin.f32 %v721, 127.0
        %v724 = vmin.f32 %v722, 127.0
        %v725 = vpack.c.bf16 %v724, %v723
        %v726 = vmul.f32 %v711, 0.007874016
        %v727 = vmul.f32 %v712, 0.007874016
        %v728 = vld [vmem:[%s387] sm:$0xf]
        %v729 = vld [vmem:[%s387 + $0x4] sm:$0xf]
        %v730 = vld [vmem:[%s387 + $0x8] sm:$0xf]
        %v731 = vld [vmem:[%s387 + $0xc] sm:$0xf]
        %v732 = vld [vmem:[%s387 + $0x10] sm:$0xf]
        %v733 = vld [vmem:[%s387 + $0x14] sm:$0xf]
        %v734 = vld [vmem:[%s387 + $0x18] sm:$0xf]
        %v735 = vld [vmem:[%s387 + $0x1c] sm:$0xf]
        %v744 = vunpack.c.l.b16 %v728
        %v745 = vunpack.c.l.b16 %v729
        %v746 = vunpack.c.l.b16 %v730
        %v747 = vunpack.c.l.b16 %v731
        %v748 = vunpack.c.l.b16 %v732
        %v749 = vunpack.c.l.b16 %v733
        %v750 = vunpack.c.l.b16 %v734
        %v751 = vunpack.c.l.b16 %v735
        %v752 = vpack.c.b16 %v745, %v744
        %v753 = vpack.c.b16 %v747, %v746
        %v754 = vpack.c.b16 %v749, %v748
        %v755 = vpack.c.b16 %v751, %v750
        %v761 = vsel %vm687, %v725, 0
        %763 = vmatprep.subr.bf16.mxu0 0
        %764 = vmatpush1.bf16.msra.mxu0 %v752
        %765 = vmatprep.subr.bf16.mxu0 0
        %766 = vmatpush1.bf16.msra.mxu0 %v753
        %767 = vmatprep.subr.bf16.mxu0 0
        %768 = vmatpush1.bf16.msra.mxu0 %v754
        %769 = vmatprep.subr.bf16.mxu0 0
        %770 = vmatpush1.bf16.msra.mxu0 %v755
        %771 = vmatprep.subr.bf16.mxu0 0
        %772 = vmatpush1.bf16.msra.mxu0 0
        %773 = vmatprep.subr.bf16.mxu0 0
        %774 = vmatpush1.bf16.msra.mxu0 0
        %775 = vmatprep.subr.bf16.mxu0 0
        %776 = vmatpush1.bf16.msra.mxu0 0
        %777 = vmatprep.subr.bf16.mxu0 0
        %778 = vmatpush1.bf16.msra.mxu0 0
        %779 = vmatprep.subr.bf16.mxu0 0
        %780 = vmatpush1.bf16.msra.mxu0 0
        %781 = vmatprep.subr.bf16.mxu0 0
        %782 = vmatpush1.bf16.msra.mxu0 0
        %783 = vmatprep.subr.bf16.mxu0 0
        %784 = vmatpush1.bf16.msra.mxu0 0
        %785 = vmatprep.subr.bf16.mxu0 0
        %786 = vmatpush1.bf16.msra.mxu0 0
        %787 = vmatprep.subr.bf16.mxu0 0
        %788 = vmatpush1.bf16.msra.mxu0 0
        %789 = vmatprep.subr.bf16.mxu0 0
        %790 = vmatpush1.bf16.msra.mxu0 0
        %791 = vmatprep.subr.bf16.mxu0 0
        %792 = vmatpush1.bf16.msra.mxu0 0
        %793 = vmatprep.subr.bf16.mxu0 0
        %794 = vmatpush1.bf16.msra.mxu0 0
        %795 = vmatprep.mubr.bf16.mxu0 0
        %796 = vmatmul.mubr.bf16.gmra.mrb[0].mxu0 %v761
        %v797 = vpop.f32.mrb[0].mxu0
        %v798 = vadd.f32 0.0, %v797
        %v799 = vpop.f32.mrb[0].mxu0
        %v800 = vpop.f32.mrb[0].mxu0
        %v801 = vadd.f32 0.0, %v800
        %v802 = vpop.f32.mrb[0].mxu0
        %803 = vdwg.mxu0
        %s804 = sld [smem:[#allocation16 + %s32]]
        %v805 = vstv %s804
        %v806 = vmul.f32 %v726, %v805
        %v807 = vmul.f32 %v727, %v805
        %v808 = vmul.f32 %v798, %v806
        %v809 = vmul.f32 %v801, %v807
        %v810 = vlaneseq
        %v811 = vand.u32 %v810, 127
        %v812 = vstv %s32
        %vm813 = vcmp.eq.s32.totalorder %v811, %v812
        %v814 = vld [vmem:[#allocation4] sm:$0xff]
        %v815 = vld [vmem:[#allocation4 + $0x8] sm:$0xff]
        %v816 = vsel %vm813, %v814, 0.0
        %v817 = vsel %vm813, %v815, 0.0
        %vm818 = vcmask 31744
        %v819 = vsel %vm818, %v816, 0.0
        %820 = vadd.xlane.f32.xlu0 %v819
        %v821 = vpop.xlane.xlu0 %820
        %v822 = vsel %vm818, %v817, 0.0
        %823 = vadd.xlane.f32.xlu0 %v822
        %v824 = vpop.xlane.xlu0 %823
        %v825 = vld [vmem:[#allocation5] sm:$0xff]
        %v826 = vld [vmem:[#allocation5 + $0x8] sm:$0xff]
        %v827 = vmul.f32 %v821, %v808
        %v828 = vmul.f32 %v824, %v809
        %v829 = vadd.f32 %v825, %v827
        %v830 = vadd.f32 %v826, %v828
        %831 = vst.msk [vmem:[#allocation5] sm:$0xff] %vm600, %v829
        %832 = vst.msk [vmem:[#allocation5 + $0x8] sm:$0xff] %vm600, %v830
        %p833 = scmp.eq.s32.totalorder %s32, 3
        // Predicated region
        $region77: #{tpu_custom_call.1} parent=47 // pred_check
          %p834 = pneg %p833
        $region78: #{tpu_custom_call.1} parent=47 // pred_check_branch
          %836 = sbr.rel (%p834) target = $region80
        $region79: #{tpu_custom_call.1} parent=47 // pred_region
          %v837 = vld [vmem:[#allocation5] sm:$0xff]
          %v838 = vld [vmem:[#allocation5 + $0x8] sm:$0xff]
          %839 = vst.msk [vmem:[#allocation18] sm:$0xff] %vm600, %v837
          %840 = vst.msk [vmem:[#allocation18 + $0x8] sm:$0xff] %vm600, %v838
        $region80: #{tpu_custom_call.1} parent=47 // pred_fallthru
          _
        // Predicated region
        $region81: #{tpu_custom_call.1} parent=47 // pred_check
          %p841 = pneg %p219
        $region82: #{tpu_custom_call.1} parent=47 // pred_check_branch
          %843 = sbr.rel (%p841) target = $region84
        $region83: #{tpu_custom_call.1} parent=47 // pred_region
          %s844 = smul.u32 2, %s31
          %s846 = ssub.s32 256, 256
          %847 = vsyncadd [#allocation9], %s846
          %s848 = smul.addr %s844, 128
          %s849 = scalar_lea.hbm %s7, %s848
          %s850 = sshll.u32 [#allocation18], 4
          %s851 = int_to_ptr.vmem [resolvable:$true] %s850
          %856 = dma.vmem_to_hbm [thread:$0]  %s851, 256, %s849, [#allocation9], 128, 128, 8
        $region84: #{tpu_custom_call.1} parent=47 // pred_fallthru
          _
        // Predicated region
        $region85: #{tpu_custom_call.1} parent=47 // pred_check
          %p857 = pneg %p245
        $region86: #{tpu_custom_call.1} parent=47 // pred_check_branch
          %859 = sbr.rel (%p857) target = $region88
        $region87: #{tpu_custom_call.1} parent=47 // pred_region
          %s860 = smul.u32 2, %s31
          %s862 = ssub.s32 256, 256
          %863 = vsyncadd [#allocation20], %s862
          %s864 = smul.addr %s860, 128
          %s865 = scalar_lea.hbm %s8, %s864
          %s866 = sshll.u32 [#allocation19], 4
          %s867 = int_to_ptr.vmem [resolvable:$true] %s866
          %872 = dma.vmem_to_hbm [thread:$0]  %s867, 256, %s865, [#allocation20], 128, 128, 8
        $region88: #{tpu_custom_call.1} parent=47 // pred_fallthru
          _
        // Predicated region
        $region89: #{tpu_custom_call.1} parent=47 // pred_check
          %p873 = pneg %p219
        $region90: #{tpu_custom_call.1} parent=47 // pred_check_branch
          %875 = sbr.rel (%p873) target = $region92
        $region91: #{tpu_custom_call.1} parent=47 // pred_region
          %876 = dma.done [#allocation9], 256
        $region92: #{tpu_custom_call.1} parent=47 // pred_fallthru
          _
        // Predicated region
        $region93: #{tpu_custom_call.1} parent=47 // pred_check
          %p877 = pneg %p245
        $region94: #{tpu_custom_call.1} parent=47 // pred_check_branch
          %879 = sbr.rel (%p877) target = $region96
        $region95: #{tpu_custom_call.1} parent=47 // pred_region
          %880 = dma.done [#allocation20], 256
        $region96: #{tpu_custom_call.1} parent=47 // pred_fallthru
          _
      $region48: #{tpu_custom_call.1} parent=5 // pred_fallthru
        _
      %p881 = scmp.le.s32.totalorder 2, %s22
      // Predicated region
      $region97: #{tpu_custom_call.1} parent=5 // pred_check
        %p882 = pneg %p881
      $region98: #{tpu_custom_call.1} parent=5 // pred_check_branch
        %884 = sbr.rel (%p882) target = $region100
      $region99: #{tpu_custom_call.1} parent=5 // pred_region
        %s885 = ssub.s32 %s22, 2
      $region100: #{tpu_custom_call.1} parent=5 // pred_fallthru
        _
    $region6: #{tpu_custom_call.1} parent=1 // loop_footer
      %s26 = sadd.s32 1, %s22
    $region7: #{tpu_custom_call.1} parent=1 // loop_footer_branch
      %21 = sbr.rel target = $region3
    $region8: #{tpu_custom_call.1} parent=1 // loop_exit
      _
    %886 = vsyncpa [#allocation8], 1
    %s887 = scalar_lea.sflag [#allocation8], 1
    %888 = vsyncpa %s887, 1
    %889 = vsyncpa [#allocation12], 1
    %890 = vsyncpa [#allocation9], 1
    %s891 = scalar_lea.sflag [#allocation9], 1
    %892 = vsyncpa %s891, 1
    %893 = vsyncpa [#allocation20], 1
    %894 = vsyncpa [#allocation10], 1
    %s895 = scalar_lea.sflag [#allocation10], 1
    %896 = vsyncpa %s895, 1
    %897 = vsyncpa [#allocation17], 1

</llo_original>
